<compile_context>
chip_gen: v6e
topology: v6e:2x2x1
jax: 0.10.0
libtpu: 0.0.40
codegen_flags: <defaults>
</compile_context>

<pallas_src>
import functools

import jax
import jax.numpy as jnp
from jax.experimental import pallas as pl
from jax.experimental.pallas import tpu as pltpu


def _rgcn_res_kernel(a_ref, xw_ref, xt_ref, wroot_ref, b_ref, o_ref,
                     *, res_scale):
    """Computes one (TM, C) output row tile.

    a_ref:     (TM, R*N) bf16  row tile of the fused adjacency [A_0|...|A_{R-1}]
    xw_ref:    (R*N, C)  bf16  stacked [X@W_0 ; ... ; X@W_{R-1}] (resident)
    xt_ref:    (TM, C)   f32   row tile of node features (root + residual)
    wroot_ref: (C, C)    bf16  root (self-loop) weight
    b_ref:     (1, C)    f32   bias
    o_ref:     (TM, C)   f32   output row tile
    """
    x_tile = xt_ref[...]

    # Fused aggregation + per-relation transform: a single long-contraction
    # bf16 matmul with f32 accumulation.
    out = jnp.dot(a_ref[...], xw_ref[...], preferred_element_type=jnp.float32)

    # Root (self) term + bias; bf16 operands, f32 accumulation.
    out = out + jnp.dot(x_tile.astype(jnp.bfloat16), wroot_ref[...],
                        preferred_element_type=jnp.float32)
    out = out + b_ref[...]

    # Post layer: ReLU (act='relu', norm=None), then residual.
    out = jnp.maximum(out, 0.0)
    o_ref[...] = (out + res_scale * x_tile).astype(o_ref.dtype)


def _round_up(v, m):
    return ((v + m - 1) // m) * m


def _vmem_capacity_bytes():
    try:
        return int(pltpu.get_tpu_info().vmem_capacity_bytes)
    except Exception:
        return 64 * 1024 * 1024  # conservative fallback (v7x per-TC VMEM)


def _pick_tiling(n, a_cols, c):
    """Returns (TM, vmem_limit_bytes), generation-aware.

    Every per-step buffer is budgeted at its *padded* VMEM size (last dim
    rounded up to 128 lanes; C=32 buffers occupy 4x their nominal bytes) and
    double-buffered by the BlockSpec pipeline.  The grid-invariant XW stack
    is charged as a fixed (double-buffered) cost.
    """
    cap = _vmem_capacity_bytes()
    # ~96 MiB on v5e/v6e (128 MiB physical), ~48 MiB on v7x (64 MiB per TC).
    vmem_limit = min(int(cap * 3 // 4), 96 * 1024 * 1024)

    c_pad = _round_up(c, 128)
    a_cols_pad = _round_up(a_cols, 128)

    # Resident inputs (double-buffered by the pipeline): XW stack + small consts.
    fixed = 2 * a_cols * c_pad * 2 + (1 << 20)

    # Per-output-row bytes of the pipelined tiles.
    per_row = (2 * a_cols_pad * 2     # A row tile: bf16, double-buffered
               + 2 * c_pad * 4        # X row tile: f32, double-buffered
               + 2 * c_pad * 4        # output tile: f32, double-buffered
               + 4 * c_pad * 4)       # f32 temporaries / headroom

    budget = max(int((vmem_limit - fixed) * 0.7), 1 << 20)
    tm = budget // per_row

    # Keep >= 2 grid steps when there is enough work to split: v7x megacore
    # shards the "parallel" grid axis across its two TensorCores, and >1 step
    # lets the pipeline overlap DMA with compute on every generation.
    if n >= 32:
        tm = min(tm, -(-n // 2))
    tm = min(tm, n)
    if tm >= 16:
        tm = (tm // 16) * 16          # bf16 sublane packing: multiples of 16
    else:
        tm = max(tm, 8)               # floor for the (8, 128) block constraint
    return int(tm), int(vmem_limit)


def res_graph_block(x, edge_index, edge_type, weights, root_weight, bias,
                    num_relations, res_scale=1.0):
    """Forward pass of ResGraphBlock.

    x:           (N, C) float32 node features
    edge_index:  (2, E) int32  [src; dst]
    edge_type:   (E,)   int32  relation id per edge
    weights:     (R, C, C)     per-relation weight (x_j @ W_r convention)
    root_weight: (C, C)
    bias:        (C,)
    Returns (out, edge_index) like the PyTorch module.
    """
    N, C = x.shape
    R = num_relations
    A_COLS = R * N

    x = x.astype(jnp.float32)
    src = edge_index[0].astype(jnp.int32)
    dst = edge_index[1].astype(jnp.int32)
    et = edge_type.astype(jnp.int32)

    # --- glue (XLA): fused mean-normalized adjacency, built in one pass ---
    # deg_r(i) = #incoming edges of relation r at node i (clamped >= 1), via a
    # tiny (R*N,) segment-sum; then scatter 1/deg directly into the bf16
    # (N, R*N) adjacency: A[i, r*N + j] = 1/deg_r(i) for every edge j->i of
    # type r (scatter-mean semantics of RGCNConv(aggr='mean')).
    deg_idx = et * N + dst
    deg = jnp.zeros((A_COLS,), jnp.float32).at[deg_idx].add(1.0)
    inv_deg = 1.0 / jnp.maximum(deg, 1.0)
    edge_val = inv_deg[deg_idx].astype(jnp.bfloat16)
    adj = jnp.zeros((N, A_COLS), jnp.bfloat16).at[dst, et * N + src].add(edge_val)

    # Reassociated transform: XW[r*N + j, :] = (X @ W_r)[j, :].
    # O(R*N*C^2) f32 compute (negligible vs the O(R*N^2*C) aggregation),
    # stored bf16 for full MXU rate inside the kernel.
    xw = jnp.einsum("nc,rcd->rnd", x, weights.astype(jnp.float32))
    xw = xw.reshape(A_COLS, C).astype(jnp.bfloat16)

    w_root = root_weight.astype(jnp.bfloat16)
    bias2d = bias.reshape(1, C).astype(jnp.float32)

    TM, vmem_limit = _pick_tiling(N, A_COLS, C)
    grid = (pl.cdiv(N, TM),)

    kernel = functools.partial(_rgcn_res_kernel, res_scale=float(res_scale))

    out = pl.pallas_call(
        kernel,
        out_shape=jax.ShapeDtypeStruct((N, C), x.dtype),
        grid_spec=pltpu.PrefetchScalarGridSpec(
            num_scalar_prefetch=0,
            grid=grid,
            in_specs=[
                pl.BlockSpec((TM, A_COLS), lambda i: (i, 0)),  # fused adjacency
                pl.BlockSpec((A_COLS, C), lambda i: (0, 0)),   # XW stack (resident)
                pl.BlockSpec((TM, C), lambda i: (i, 0)),       # X f32 row tile
                pl.BlockSpec((C, C), lambda i: (0, 0)),        # W_root (bf16)
                pl.BlockSpec((1, C), lambda i: (0, 0)),        # bias
            ],
            out_specs=pl.BlockSpec((TM, C), lambda i: (i, 0)),
        ),
        compiler_params=pltpu.CompilerParams(
            dimension_semantics=("parallel",),
            vmem_limit_bytes=vmem_limit,
        ),
    )(adj, xw, x, w_root, bias2d)

    return out, edge_index


def _reference(x, edge_index, edge_type, weights, root_weight, bias,
               num_relations, res_scale):
    """Pure f32 JAX reference matching RGCNConv(aggr='mean') + ReLU + residual."""
    N, C = x.shape
    src, dst = edge_index[0], edge_index[1]
    adj = jnp.zeros((num_relations, N, N), dtype=jnp.float32)
    adj = adj.at[edge_type, dst, src].add(1.0)
    deg = jnp.sum(adj, axis=2, keepdims=True)
    adj = adj / jnp.maximum(deg, 1.0)
    out = x @ root_weight + bias[None, :]
    for r in range(num_relations):
        out = out + (adj[r] @ x) @ weights[r]
    out = jnp.maximum(out, 0.0)
    return out + res_scale * x


if __name__ == "__main__":
    key = jax.random.PRNGKey(0)
    N = 16           # nodes
    C = 32           # in_channels == out_channels (required by residual)
    R = 3            # num_relations
    E = 40           # edges
    res_scale = 1.0

    k_x, k_src, k_dst, k_et, k_w, k_wr, k_b = jax.random.split(key, 7)
    x = jax.random.normal(k_x, (N, C), dtype=jnp.float32)
    edge_index = jnp.stack([
        jax.random.randint(k_src, (E,), 0, N),
        jax.random.randint(k_dst, (E,), 0, N),
    ]).astype(jnp.int32)
    edge_type = jax.random.randint(k_et, (E,), 0, R).astype(jnp.int32)

    # Deterministic parameter init (Glorot-ish scale).
    scale = 1.0 / jnp.sqrt(jnp.float32(C))
    weights = jax.random.normal(k_w, (R, C, C), dtype=jnp.float32) * scale
    root_weight = jax.random.normal(k_wr, (C, C), dtype=jnp.float32) * scale
    bias = jax.random.normal(k_b, (C,), dtype=jnp.float32) * 0.1

    out, ei = res_graph_block(x, edge_index, edge_type, weights, root_weight,
                              bias, num_relations=R, res_scale=res_scale)
    out = jax.block_until_ready(out)

    ref = _reference(x, edge_index, edge_type, weights, root_weight, bias,
                     R, res_scale)
    # Tolerance relaxed vs the pure-f32 path: adjacency, XW and the root-term
    # operands are bf16 (f32 accumulation).
    assert jnp.allclose(out, ref, atol=5e-2, rtol=5e-2), (
        "mismatch vs reference, max abs diff = "
        f"{jnp.max(jnp.abs(out - ref)):.4e}")
    assert ei.shape == edge_index.shape

    print("KERNEL_OK")
</pallas_src>

<mosaic_0001>
module attributes {stable_mosaic.version = 11 : i64} {
  func.func @_rgcn_res_kernel(%arg0: i32, %arg1: memref<16x48xbf16, #tpu.memory_space<vmem>>, %arg2: memref<48x32xbf16, #tpu.memory_space<vmem>>, %arg3: memref<16x32xf32, #tpu.memory_space<vmem>>, %arg4: memref<32x32xbf16, #tpu.memory_space<vmem>>, %arg5: memref<1x32xf32, #tpu.memory_space<vmem>>, %arg6: memref<16x32xf32, #tpu.memory_space<vmem>>) attributes {dimension_semantics = [#tpu.dimension_semantics<parallel>], iteration_bounds = array<i64: 1>, scalar_prefetch = 0 : i64, scratch_operands = 0 : i64, tpu.core_type = #tpu.core_type<tc>, window_params = [{transform_indices = @transform_0, window_bounds = array<i64: 16, 48>}, {pipeline_mode = #tpu.pipeline_mode<synchronous>, transform_indices = @transform_1, window_bounds = array<i64: 48, 32>}, {transform_indices = @transform_2, window_bounds = array<i64: 16, 32>}, {pipeline_mode = #tpu.pipeline_mode<synchronous>, transform_indices = @transform_3, window_bounds = array<i64: 32, 32>}, {pipeline_mode = #tpu.pipeline_mode<synchronous>, transform_indices = @transform_4, window_bounds = array<i64: 1, 32>}, {transform_indices = @transform_5, window_bounds = array<i64: 16, 32>}]} {
    %c0 = arith.constant 0 : index
    %c0_0 = arith.constant 0 : index
    %0 = vector.load %arg3[%c0, %c0_0] : memref<16x32xf32, #tpu.memory_space<vmem>>, vector<16x32xf32>
    %c0_1 = arith.constant 0 : index
    %c0_2 = arith.constant 0 : index
    %1 = vector.load %arg1[%c0_1, %c0_2] : memref<16x48xbf16, #tpu.memory_space<vmem>>, vector<16x48xbf16>
    %c0_3 = arith.constant 0 : index
    %c0_4 = arith.constant 0 : index
    %2 = vector.load %arg2[%c0_3, %c0_4] : memref<48x32xbf16, #tpu.memory_space<vmem>>, vector<48x32xbf16>
    %cst = arith.constant dense<0.000000e+00> : vector<16x32xf32>
    %3 = tpu.matmul %1, %2, %cst {dimension_numbers = #tpu.dot_dimension_numbers<[1], [0], [0], [1], [0, 0, 1, 1], [], []>} : vector<16x48xbf16>, vector<48x32xbf16>, vector<16x32xf32> -> vector<16x32xf32>
    %4 = arith.truncf %0 : vector<16x32xf32> to vector<16x32xbf16>
    %c0_5 = arith.constant 0 : index
    %c0_6 = arith.constant 0 : index
    %5 = vector.load %arg4[%c0_5, %c0_6] : memref<32x32xbf16, #tpu.memory_space<vmem>>, vector<32x32xbf16>
    %cst_7 = arith.constant dense<0.000000e+00> : vector<16x32xf32>
    %6 = tpu.matmul %4, %5, %cst_7 {dimension_numbers = #tpu.dot_dimension_numbers<[1], [0], [0], [1], [0, 0, 1, 1], [], []>} : vector<16x32xbf16>, vector<32x32xbf16>, vector<16x32xf32> -> vector<16x32xf32>
    %7 = arith.addf %3, %6 : vector<16x32xf32>
    %c0_8 = arith.constant 0 : index
    %c0_9 = arith.constant 0 : index
    %8 = vector.load %arg5[%c0_8, %c0_9] : memref<1x32xf32, #tpu.memory_space<vmem>>, vector<1x32xf32>
    %9 = vector.broadcast %8 : vector<1x32xf32> to vector<16x32xf32>
    %10 = arith.addf %7, %9 : vector<16x32xf32>
    %cst_10 = arith.constant 0.000000e+00 : f32
    %11 = vector.broadcast %cst_10 : f32 to vector<16x32xf32>
    %12 = arith.maximumf %10, %11 : vector<16x32xf32>
    %cst_11 = arith.constant 1.000000e+00 : f32
    %13 = vector.broadcast %cst_11 : f32 to vector<16x32xf32>
    %14 = arith.mulf %13, %0 : vector<16x32xf32>
    %15 = arith.addf %12, %14 : vector<16x32xf32>
    %c0_12 = arith.constant 0 : index
    %c0_13 = arith.constant 0 : index
    %16 = vector.load %arg6[%c0_12, %c0_13] : memref<16x32xf32, #tpu.memory_space<vmem>>, vector<16x32xf32>
    tpu.vector_store %arg6[%c0_12, %c0_13], %15 {strides = array<i32>} : memref<16x32xf32, #tpu.memory_space<vmem>>, vector<16x32xf32>,
    return
  }
  func.func @transform_0(%arg0: i32) -> (i32, i32) {
    %c0_i32 = arith.constant 0 : i32
    %c0_i32_0 = arith.constant 0 : i32
    return %arg0, %c0_i32 : i32, i32
  }
  func.func @transform_1(%arg0: i32) -> (i32, i32) {
    %c0_i32 = arith.constant 0 : i32
    %c0_i32_0 = arith.constant 0 : i32
    %c0_i32_1 = arith.constant 0 : i32
    return %c0_i32, %c0_i32_0 : i32, i32
  }
  func.func @transform_2(%arg0: i32) -> (i32, i32) {
    %c0_i32 = arith.constant 0 : i32
    %c0_i32_0 = arith.constant 0 : i32
    return %arg0, %c0_i32 : i32, i32
  }
  func.func @transform_3(%arg0: i32) -> (i32, i32) {
    %c0_i32 = arith.constant 0 : i32
    %c0_i32_0 = arith.constant 0 : i32
    %c0_i32_1 = arith.constant 0 : i32
    return %c0_i32, %c0_i32_0 : i32, i32
  }
  func.func @transform_4(%arg0: i32) -> (i32, i32) {
    %c0_i32 = arith.constant 0 : i32
    %c0_i32_0 = arith.constant 0 : i32
    %c0_i32_1 = arith.constant 0 : i32
    return %c0_i32, %c0_i32_0 : i32, i32
  }
  func.func @transform_5(%arg0: i32) -> (i32, i32) {
    %c0_i32 = arith.constant 0 : i32
    %c0_i32_0 = arith.constant 0 : i32
    return %arg0, %c0_i32 : i32, i32
  }
}

</mosaic_0001>

<llo_original>
// kernel: tpu_custom_call.1
$region0: #{tpu_custom_call.1}
  #allocation0 [shape = 'u32[]', space=smem, size = 0x4, offset = 0x4, fixed_abs, tag = 'smem constant byte address 0x4 - core index']
  #allocation1 [shape = 'u32[144,128]{1,0:T(1,128)}', space=vmem, size = 0x12000, scoped, tag = 'internal scratch']
  %s0 = inlined_call_operand.vmem [shape: bf16[16,48], index: 0, kind: input, shape index: {}]
  %s1 = inlined_call_operand.vmem [shape: bf16[48,32], index: 1, kind: input, shape index: {}]
  %s2 = inlined_call_operand.vmem [shape: f32[16,32], index: 2, kind: input, shape index: {}]
  %s3 = inlined_call_operand.vmem [shape: bf16[32,32], index: 3, kind: input, shape index: {}]
  %s4 = inlined_call_operand.vmem [shape: f32[1,32], index: 4, kind: input, shape index: {}]
  %s5 = inlined_call_operand.hbm [shape: f32[16,32], index: 5, kind: output, shape index: {}]
  %s6 = sld [smem:[#allocation0]]
  $region30: #{tpu_custom_call.1} parent=0
    _
  %s8 = ssub.s32 1, %s6
  %s9 = scalar_select 0, %s8, %s6
  $region1: #{tpu_custom_call.1} parent=0
    #allocation2 [shape = 'u8[8192]{0}', space=vmem, size = 0x2000, scoped, tag = 'output window, operand 0, single buffered']
    #allocation3 [shape = 's32[1]{0}', space=sflag, size = 0x4, scoped, tag = 'scoped memory for tpu_custom_call.1']
    %10 = vsyncpa [#allocation3], 0
    // Predicated region
    $region2: #{tpu_custom_call.1} parent=1 // pred_check
      _
    $region3: #{tpu_custom_call.1} parent=1 // pred_check_branch
      %12 = sbr.rel (0) target = $region5
    $region4: #{tpu_custom_call.1} parent=1 // pred_region
      _
    $region5: #{tpu_custom_call.1} parent=1 // pred_fallthru
      _
    // Predicated region
    $region6: #{tpu_custom_call.1} parent=1 // pred_check
      _
    $region7: #{tpu_custom_call.1} parent=1 // pred_check_branch
      %14 = sbr.rel (0) target = $region9
    $region8: #{tpu_custom_call.1} parent=1 // pred_region
      _
    $region9: #{tpu_custom_call.1} parent=1 // pred_fallthru
      _
    // Predicated region
    $region10: #{tpu_custom_call.1} parent=1 // pred_check
      _
    $region11: #{tpu_custom_call.1} parent=1 // pred_check_branch
      %16 = sbr.rel (0) target = $region13
    $region12: #{tpu_custom_call.1} parent=1 // pred_region
      _
    $region13: #{tpu_custom_call.1} parent=1 // pred_fallthru
      _
    // Predicated region
    $region14: #{tpu_custom_call.1} parent=1 // pred_check
      _
    $region15: #{tpu_custom_call.1} parent=1 // pred_check_branch
      %18 = sbr.rel (0) target = $region17
    $region16: #{tpu_custom_call.1} parent=1 // pred_region
      _
    $region17: #{tpu_custom_call.1} parent=1 // pred_fallthru
      _
    // Predicated region
    $region18: #{tpu_custom_call.1} parent=1 // pred_check
      _
    $region19: #{tpu_custom_call.1} parent=1 // pred_check_branch
      %20 = sbr.rel (0) target = $region21
    $region20: #{tpu_custom_call.1} parent=1 // pred_region
      _
    $region21: #{tpu_custom_call.1} parent=1 // pred_fallthru
      _
    %v22 = vld [vmem:[%s2] sm:$0xff]
    %v23 = vld [vmem:[%s2 + $0x8] sm:$0xff]
    %v24 = vld [vmem:[%s0] sm:$0xf]
    %v25 = vld [vmem:[%s0 + $0x4] sm:$0xf]
    %v26 = vld [vmem:[%s1] sm:$0xf]
    %v27 = vld [vmem:[%s1 + $0x4] sm:$0xf]
    %v28 = vld [vmem:[%s1 + $0x8] sm:$0xf]
    %v29 = vld [vmem:[%s1 + $0xc] sm:$0xf]
    %v30 = vld [vmem:[%s1 + $0x10] sm:$0xf]
    %v31 = vld [vmem:[%s1 + $0x14] sm:$0xf]
    %v32 = vpack.c.bf16 %v23, %v22
    %v33 = vld [vmem:[%s3] sm:$0xf]
    %v34 = vld [vmem:[%s3 + $0x4] sm:$0xf]
    %v35 = vld [vmem:[%s3 + $0x8] sm:$0xf]
    %v36 = vld [vmem:[%s3 + $0xc] sm:$0xf]
    %v41 = vunpack.c.l.b16 %v33
    %v42 = vunpack.c.l.b16 %v34
    %v43 = vunpack.c.l.b16 %v35
    %v44 = vunpack.c.l.b16 %v36
    %v45 = vpack.c.b16 %v42, %v41
    %v46 = vpack.c.b16 %v44, %v43
    %vm49 = vcmask 261120
    %v51 = vsel %vm49, %v32, 0
    %53 = vmatprep.subr.bf16.mxu0 0
    %54 = vmatpush1.bf16.msra.mxu0 0
    %55 = vmatprep.subr.bf16.mxu0 0
    %56 = vmatpush1.bf16.msra.mxu0 0
    %57 = vmatprep.subr.bf16.mxu0 0
    %58 = vmatpush1.bf16.msra.mxu0 0
    %59 = vmatprep.subr.bf16.mxu0 0
    %60 = vmatpush1.bf16.msra.mxu0 0
    %61 = vmatprep.subr.bf16.mxu0 0
    %62 = vmatpush1.bf16.msra.mxu0 0
    %63 = vmatprep.subr.bf16.mxu0 0
    %64 = vmatpush1.bf16.msra.mxu0 0
    %65 = vmatprep.subr.bf16.mxu0 0
    %66 = vmatpush1.bf16.msra.mxu0 %v46
    %67 = vmatprep.subr.bf16.mxu0 0
    %68 = vmatpush1.bf16.msra.mxu0 %v45
    %69 = vmatprep.subr.bf16.mxu0 0
    %70 = vmatpush2.bf16.msra.mxu0 0
    %71 = vmatprep.subr.bf16.mxu0 0
    %72 = vmatpush2.bf16.msra.mxu0 0
    %73 = vmatprep.subr.bf16.mxu0 0
    %74 = vmatpush2.bf16.msra.mxu0 0
    %75 = vmatprep.subr.bf16.mxu0 0
    %76 = vmatpush2.bf16.msra.mxu0 0
    %77 = vmatprep.subr.bf16.mxu0 0
    %78 = vmatpush2.bf16.msra.mxu0 0
    %79 = vmatprep.subr.bf16.mxu0 0
    %80 = vmatpush2.bf16.msra.mxu0 0
    %81 = vmatprep.subr.bf16.mxu0 0
    %82 = vmatpush2.bf16.msra.mxu0 0
    %83 = vmatprep.subr.bf16.mxu0 0
    %84 = vmatpush2.bf16.msra.mxu0 0
    %85 = vmatprep.mubr.bf16.mxu0 0
    %86 = vmatmul.mubr.bf16.gmra.mxu0 %v51
    %v87 = vpop.f32.mrf.mxu0
    %v88 = vadd.f32 0.0, %v87
    %v89 = vpop.f32.mrf.mxu0
    %v90 = vpop.f32.mrf.mxu0
    %v91 = vadd.f32 0.0, %v90
    %v92 = vpop.f32.mrf.mxu0
    %93 = vdwg.mxu0
    %v96 = vunpack.c.l.b16 %v24
    %v97 = vunpack.c.l.b16 %v25
    %v98 = vpack.c.b16 %v97, %v96
    %v105 = vunpack.c.l.b16 %v26
    %v106 = vunpack.c.l.b16 %v27
    %v107 = vunpack.c.l.b16 %v28
    %v108 = vunpack.c.l.b16 %v29
    %v109 = vunpack.c.l.b16 %v30
    %v110 = vunpack.c.l.b16 %v31
    %v111 = vpack.c.b16 %v106, %v105
    %v112 = vpack.c.b16 %v108, %v107
    %v113 = vpack.c.b16 %v110, %v109
    %vm117 = vcmask 392192
    %v119 = vsel %vm117, %v98, 0
    %121 = vmatprep.subr.bf16.mxu0 0
    %122 = vmatpush1.bf16.msra.mxu0 0
    %123 = vmatprep.subr.bf16.mxu0 0
    %124 = vmatpush1.bf16.msra.mxu0 0
    %125 = vmatprep.subr.bf16.mxu0 0
    %126 = vmatpush1.bf16.msra.mxu0 0
    %127 = vmatprep.subr.bf16.mxu0 0
    %128 = vmatpush1.bf16.msra.mxu0 0
    %129 = vmatprep.subr.bf16.mxu0 0
    %130 = vmatpush1.bf16.msra.mxu0 0
    %131 = vmatprep.subr.bf16.mxu0 0
    %132 = vmatpush1.bf16.msra.mxu0 %v113
    %133 = vmatprep.subr.bf16.mxu0 0
    %134 = vmatpush1.bf16.msra.mxu0 %v112
    %135 = vmatprep.subr.bf16.mxu0 0
    %136 = vmatpush1.bf16.msra.mxu0 %v111
    %137 = vmatprep.subr.bf16.mxu0 0
    %138 = vmatpush2.bf16.msra.mxu0 0
    %139 = vmatprep.subr.bf16.mxu0 0
    %140 = vmatpush2.bf16.msra.mxu0 0
    %141 = vmatprep.subr.bf16.mxu0 0
    %142 = vmatpush2.bf16.msra.mxu0 0
    %143 = vmatprep.subr.bf16.mxu0 0
    %144 = vmatpush2.bf16.msra.mxu0 0
    %145 = vmatprep.subr.bf16.mxu0 0
    %146 = vmatpush2.bf16.msra.mxu0 0
    %147 = vmatprep.subr.bf16.mxu0 0
    %148 = vmatpush2.bf16.msra.mxu0 0
    %149 = vmatprep.subr.bf16.mxu0 0
    %150 = vmatpush2.bf16.msra.mxu0 0
    %151 = vmatprep.subr.bf16.mxu0 0
    %152 = vmatpush2.bf16.msra.mxu0 0
    %153 = vmatprep.mubr.bf16.mxu0 0
    %154 = vmatmul.mubr.bf16.gmra.mxu0 %v119
    %v155 = vpop.f32.mrf.mxu0
    %v156 = vadd.f32 %v88, %v155
    %v157 = vpop.f32.mrf.mxu0
    %v158 = vpop.f32.mrf.mxu0
    %v159 = vadd.f32 %v91, %v158
    %v160 = vpop.f32.mrf.mxu0
    %161 = vdwg.mxu0
    %v162 = vld [vmem:[%s4] sm:$0x1]
    %v164 = vlaneseq
    %v165 = vshrl.u32 %v164, 7
    %v166 = vsub.s32 0, %v165
    %v167 = vrot.slane %v162, %v166
    %v169 = vadd.f32 %v156, %v167
    %v170 = vadd.f32 %v159, %v167
    %v171 = vmax.f32 %v169, 0.0
    %v172 = vmax.f32 %v170, 0.0
    %v173 = vadd.f32 %v171, %v22
    %v174 = vadd.f32 %v172, %v23
    %175 = vst.msk [vmem:[#allocation2] sm:$0xff] %vm49, %v173
    %176 = vst.msk [vmem:[#allocation2 + $0x8] sm:$0xff] %vm49, %v174
    // Predicated region
    $region22: #{tpu_custom_call.1} parent=1 // pred_check
      _
    $region23: #{tpu_custom_call.1} parent=1 // pred_check_branch
      %178 = sbr.rel (0) target = $region25
    $region24: #{tpu_custom_call.1} parent=1 // pred_region
      %s180 = ssub.s32 256, 256
      %181 = vsyncadd [#allocation3], %s180
      %s182 = sshll.u32 [#allocation2], 4
      %s183 = int_to_ptr.vmem [resolvable:$true] %s182
      %188 = dma.vmem_to_hbm [thread:$0]  %s183, 256, %s5, [#allocation3], 128, 128, 8
    $region25: #{tpu_custom_call.1} parent=1 // pred_fallthru
      _
    // Predicated region
    $region26: #{tpu_custom_call.1} parent=1 // pred_check
      _
    $region27: #{tpu_custom_call.1} parent=1 // pred_check_branch
      %190 = sbr.rel (0) target = $region29
    $region28: #{tpu_custom_call.1} parent=1 // pred_region
      %191 = dma.done [#allocation3], 256
    $region29: #{tpu_custom_call.1} parent=1 // pred_fallthru
      _
    %192 = vsyncpa [#allocation3], 1

</llo_original>
